<compile_context>
chip_gen: v6e
topology: v6e:2x2x1
jax: 0.10.0
libtpu: 0.0.40
codegen_flags: <defaults>
</compile_context>

<pallas_src>
import math

import jax
import jax.numpy as jnp
from jax.experimental import pallas as pl
from jax.experimental.pallas import tpu as pltpu


def _round_up(x, m):
    return -(-x // m) * m


def _make_dss_kernel(C, BH, TL):
    """One grid step: dense block-diagonal matmul + one dense store."""

    def kernel(wblk_ref, e0_ref, out_ref):
        # wblk_ref: (1, 1, C*BH, BH*2N)  [Re(W'*carry) | -Im(W'*carry)] block-diag over h
        # e0_ref:   (1, BH*2N, TL)       [Re(exp(dtL*j)) | Im(exp(dtL*j))],  j in [0, TL)
        # out_ref:  (C, BH, TL)
        w = wblk_ref[0, 0]                                   # (C*BH, BH*2N)
        e = e0_ref[0]                                        # (BH*2N, TL)
        k = jax.lax.dot_general(w, e, (((1,), (0,)), ((), ())),
                                preferred_element_type=jnp.float32)   # (C*BH, TL)
        out_ref[...] = k.reshape(out_ref.shape).astype(out_ref.dtype)

    return kernel


def dss_kernel_forward(W, log_dt, lambda_log_neg_re, lambda_im, L, *,
                       tile_l=2048, eps=1e-7):
    """DSSKernel.forward(L) for version='exp', kernel_to_real='real'.

    Returns K of shape (C, H, L), float32 (real part of the complex kernel).
    """
    assert L >= 1
    C, H, N, _ = W.shape
    BH = 8                      # hidden units per block == sublane count -> dense stores
    f32 = jnp.float32

    # ------- loop-invariant parameter prep in plain JAX (tiny vs the O(C*H*N*L) kernel) ------
    lam_re = -jnp.exp(lambda_log_neg_re).astype(f32)          # (N,)   Re(Lambda) < 0
    lam_im = lambda_im.astype(f32)                            # (N,)   Im(Lambda)

    # pad N so BH*2N is lane-aligned (padded modes have Lambda=0, W=0 -> contribute 0)
    Np = _round_up(N, 8)
    if Np != N:
        lam_re = jnp.pad(lam_re, (0, Np - N))
        lam_im = jnp.pad(lam_im, (0, Np - N))
        W = jnp.pad(W, ((0, 0), (0, 0), (0, Np - N), (0, 0)))
    N2 = 2 * Np

    dt = jnp.exp(log_dt).astype(f32)                          # (H,)
    dlr = dt[:, None] * lam_re[None, :]                       # (H, Np)  Re(dt*Lambda)
    dli = dt[:, None] * lam_im[None, :]                       # (H, Np)  Im(dt*Lambda)

    # W' = W * (exp(dt*Lambda) - 1) * reciprocal(Lambda, clamp=True)
    e = jnp.exp(dlr)
    edr = e * jnp.cos(dli) - 1.0
    edi = e * jnp.sin(dli)
    norm = jnp.maximum(lam_re * lam_re + lam_im * lam_im, eps)
    rr = lam_re / norm
    ri = -lam_im / norm
    sr = edr * rr - edi * ri                                  # (H, Np)  Re(scale)
    si = edr * ri + edi * rr                                  # (H, Np)  Im(scale)

    Wr = jnp.transpose(W[..., 0], (1, 0, 2)).astype(f32)      # (H, C, Np)
    Wi = jnp.transpose(W[..., 1], (1, 0, 2)).astype(f32)
    Wpr = Wr * sr[:, None, :] - Wi * si[:, None, :]           # Re(W')
    Wpi = Wr * si[:, None, :] + Wi * sr[:, None, :]           # Im(W')

    # pad H to a multiple of BH (padded rows: dt*Lambda=0, W'=0 -> K=0, sliced off at the end)
    Hp = _round_up(H, BH)
    if Hp != H:
        ph = Hp - H
        dlr = jnp.pad(dlr, ((0, ph), (0, 0)))
        dli = jnp.pad(dli, ((0, ph), (0, 0)))
        Wpr = jnp.pad(Wpr, ((0, ph), (0, 0), (0, 0)))
        Wpi = jnp.pad(Wpi, ((0, ph), (0, 0), (0, 0)))
    G = Hp // BH

    # L tiling
    TL = min(_round_up(tile_l, 128), _round_up(L, 128))
    Lp = _round_up(L, TL)
    n_l = Lp // TL

    # E0[h, n, j] = exp(dt*Lambda[h,n] * j), j in [0, TL); packed per h-block as
    # (G, BH*2N, TL) with rows ordered (h_local, [Re]*Np ++ [Im]*Np).
    j = jnp.arange(TL, dtype=f32)
    emag = jnp.exp(dlr[:, :, None] * j[None, None, :])        # (Hp, Np, TL)
    eph = dli[:, :, None] * j[None, None, :]
    E0 = jnp.concatenate([emag * jnp.cos(eph), emag * jnp.sin(eph)], axis=1)  # (Hp, 2Np, TL)
    E0 = E0.reshape(G, BH * N2, TL)

    # per-tile carry = exp(dt*Lambda * l*TL), folded into the weights: W'' = W' * carry
    t0 = jnp.arange(n_l, dtype=f32) * TL                      # (n_l,)
    cmag = jnp.exp(dlr[None, :, :] * t0[:, None, None])       # (n_l, Hp, Np)
    cph = dli[None, :, :] * t0[:, None, None]
    cre = cmag * jnp.cos(cph)
    cim = cmag * jnp.sin(cph)
    Wtr = Wpr[None] * cre[:, :, None, :] - Wpi[None] * cim[:, :, None, :]   # (n_l, Hp, C, Np)
    Wti = Wpr[None] * cim[:, :, None, :] + Wpi[None] * cre[:, :, None, :]
    Wcat = jnp.concatenate([Wtr, -Wti], axis=-1)              # (n_l, Hp, C, 2Np) = [Re | -Im]

    # block-diagonalize over the BH units of each h-block:
    #   Wblk[l, g, c*BH + h, h*2Np + n] = Wcat[l, g*BH + h, c, n]
    eye = jnp.eye(BH, dtype=f32)
    Wc = Wcat.reshape(n_l, G, BH, C, N2)
    Wblk = jnp.einsum('lghcn,hk->lgchkn', Wc, eye).reshape(n_l, G, C * BH, BH * N2)

    # ---------------------------------- Pallas call -----------------------------------------
    kernel = _make_dss_kernel(C, BH, TL)

    vmem_need = (2 * BH * N2 * TL * 4         # E0 block (double-buffered)
                 + 2 * C * BH * BH * N2 * 4   # Wblk block
                 + 2 * C * BH * TL * 4)       # out block
    vmem_limit = int(min(max(vmem_need + (8 << 20), 32 << 20), 100 << 20))

    cost = pl.CostEstimate(
        flops=int(2 * G * n_l * (C * BH) * (BH * N2) * TL),
        transcendentals=0,
        bytes_accessed=int(4 * (Wblk.size + E0.size + C * Hp * Lp)),
    )

    out = pl.pallas_call(
        kernel,
        out_shape=jax.ShapeDtypeStruct((C, Hp, Lp), jnp.float32),
        grid_spec=pltpu.PrefetchScalarGridSpec(
            num_scalar_prefetch=0,
            grid=(G, n_l),
            in_specs=[
                # per-tile block-diagonal weights: small, re-fetched every step
                pl.BlockSpec((1, 1, C * BH, BH * N2), lambda g, l: (l, g, 0, 0)),
                # E0: index does not depend on l -> resident across the whole L sweep
                pl.BlockSpec((1, BH * N2, TL), lambda g, l: (g, 0, 0)),
            ],
            out_specs=pl.BlockSpec((C, BH, TL), lambda g, l: (0, g, l)),
        ),
        compiler_params=pltpu.CompilerParams(
            # every (h-block, l-tile) is independent -> both axes parallel; the v7x megacore
            # can split the L axis even when Hp//BH == 1 (v5e/v6e are single-TC, no effect).
            dimension_semantics=("parallel", "parallel"),
            vmem_limit_bytes=vmem_limit,
        ),
        cost_estimate=cost,
    )(Wblk, E0)

    return out[:, :H, :L]                                     # (C, H, L)


def dss_reference(W, log_dt, lambda_log_neg_re, lambda_im, L):
    """Pure-JAX reference reproducing the PyTorch semantics (version='exp', 'real')."""
    Lam = -jnp.exp(lambda_log_neg_re) + 1j * lambda_im                 # (N,)
    Wc = W[..., 0] + 1j * W[..., 1]                                    # (C, H, N)
    dt = jnp.exp(log_dt)
    dtL = dt[:, None] * Lam                                            # (H, N)
    norm = jnp.maximum((Lam * jnp.conj(Lam)).real, 1e-7)
    recip = jnp.conj(Lam) / norm
    Wc = Wc * (jnp.exp(dtL) - 1.0) * recip
    pos = jnp.arange(L)
    P = dtL[:, :, None] * pos                                          # (H, N, L)
    K = jnp.einsum('chn,hnl->chl', Wc, jnp.exp(P))
    return K.real.astype(jnp.float32)                                  # kernel_to_real='real'


if __name__ == "__main__":
    # DSSKernel(H=8, N=64, channels=1), dt_min=1e-3, dt_max=0.1, Lambda_init='lin', L=256
    H, N, C, L = 8, 64, 1, 256
    dt_min, dt_max = 1e-3, 0.1

    key = jax.random.PRNGKey(0)
    k_dt, k_w = jax.random.split(key)

    # log_dt = log(dt_min) + rand(H) * (log(dt_max) - log(dt_min))
    log_dt = (math.log(dt_min)
              + jax.random.uniform(k_dt, (H,), dtype=jnp.float32)
              * (math.log(dt_max) - math.log(dt_min)))
    # Lambda_init='lin': Lambda = -0.5 + 1j*pi*arange(N)  => for version='exp':
    lambda_log_neg_re = jnp.full((N,), math.log(0.5), dtype=jnp.float32)   # log(-Re(Lambda))
    lambda_im = (jnp.pi * jnp.arange(N)).astype(jnp.float32)               # Im(Lambda)
    # W ~ randn(channels, H, N, 2)
    W = jax.random.normal(k_w, (C, H, N, 2), dtype=jnp.float32)

    # tile_l=128 so that L=256 uses two L-tiles and exercises the per-tile carry fold.
    K = dss_kernel_forward(W, log_dt, lambda_log_neg_re, lambda_im, L, tile_l=128)
    K = jax.block_until_ready(K)

    K_ref = dss_reference(W, log_dt, lambda_log_neg_re, lambda_im, L)
    assert K.shape == (C, H, L)
    err = float(jnp.max(jnp.abs(K - K_ref)))
    assert jnp.allclose(K, K_ref, rtol=1e-3, atol=2e-3), f"max abs err {err}"

    print("KERNEL_OK")
</pallas_src>

<mosaic_0001>
module attributes {stable_mosaic.version = 11 : i64} {
  func.func @kernel(%arg0: i32, %arg1: i32, %arg2: memref<1x1x8x1024xf32, #tpu.memory_space<vmem>>, %arg3: memref<1x1024x128xf32, #tpu.memory_space<vmem>>, %arg4: memref<1x8x128xf32, #tpu.memory_space<vmem>>) attributes {dimension_semantics = [#tpu.dimension_semantics<parallel>, #tpu.dimension_semantics<parallel>], iteration_bounds = array<i64: 1, 2>, scalar_prefetch = 0 : i64, scratch_operands = 0 : i64, tpu.core_type = #tpu.core_type<tc>, window_params = [{transform_indices = @transform_0, window_bounds = array<i64: 1, 1, 8, 1024>}, {transform_indices = @transform_1, window_bounds = array<i64: 1, 1024, 128>}, {transform_indices = @transform_2, window_bounds = array<i64: 1, 8, 128>}]} {
    %c0 = arith.constant 0 : index
    %c0_0 = arith.constant 0 : index
    %c0_1 = arith.constant 0 : index
    %c0_2 = arith.constant 0 : index
    %0 = vector.load %arg2[%c0, %c0_0, %c0_1, %c0_2] : memref<1x1x8x1024xf32, #tpu.memory_space<vmem>>, vector<1x1x8x1024xf32>
    %1 = vector.shape_cast %0 : vector<1x1x8x1024xf32> to vector<8x1024xf32>
    %c0_3 = arith.constant 0 : index
    %c0_4 = arith.constant 0 : index
    %c0_5 = arith.constant 0 : index
    %2 = vector.load %arg3[%c0_3, %c0_4, %c0_5] : memref<1x1024x128xf32, #tpu.memory_space<vmem>>, vector<1x1024x128xf32>
    %3 = vector.shape_cast %2 : vector<1x1024x128xf32> to vector<1024x128xf32>
    %cst = arith.constant dense<0.000000e+00> : vector<8x128xf32>
    %4 = tpu.matmul %1, %3, %cst {dimension_numbers = #tpu.dot_dimension_numbers<[1], [0], [0], [1], [0, 0, 1, 1], [], []>} : vector<8x1024xf32>, vector<1024x128xf32>, vector<8x128xf32> -> vector<8x128xf32>
    %5 = vector.shape_cast %4 : vector<8x128xf32> to vector<1x8x128xf32>
    %c0_6 = arith.constant 0 : index
    %c0_7 = arith.constant 0 : index
    %c0_8 = arith.constant 0 : index
    %6 = vector.load %arg4[%c0_6, %c0_7, %c0_8] : memref<1x8x128xf32, #tpu.memory_space<vmem>>, vector<1x8x128xf32>
    tpu.vector_store %arg4[%c0_6, %c0_7, %c0_8], %5 {strides = array<i32>} : memref<1x8x128xf32, #tpu.memory_space<vmem>>, vector<1x8x128xf32>,
    return
  }
  func.func @transform_0(%arg0: i32, %arg1: i32) -> (i32, i32, i32, i32) {
    %c0_i32 = arith.constant 0 : i32
    %c0_i32_0 = arith.constant 0 : i32
    %c0_i32_1 = arith.constant 0 : i32
    return %arg1, %arg0, %c0_i32, %c0_i32_0 : i32, i32, i32, i32
  }
  func.func @transform_1(%arg0: i32, %arg1: i32) -> (i32, i32, i32) {
    %c0_i32 = arith.constant 0 : i32
    %c0_i32_0 = arith.constant 0 : i32
    %c0_i32_1 = arith.constant 0 : i32
    return %arg0, %c0_i32, %c0_i32_0 : i32, i32, i32
  }
  func.func @transform_2(%arg0: i32, %arg1: i32) -> (i32, i32, i32) {
    %c0_i32 = arith.constant 0 : i32
    %c0_i32_0 = arith.constant 0 : i32
    return %c0_i32, %arg0, %arg1 : i32, i32, i32
  }
}

</mosaic_0001>

<llo_original>
// kernel: tpu_custom_call.1
$region0: #{tpu_custom_call.1}
  #allocation0 [shape = 'u32[]', space=smem, size = 0x4, offset = 0x4, fixed_abs, tag = 'smem constant byte address 0x4 - core index']
  #allocation1 [shape = 'u32[144,128]{1,0:T(1,128)}', space=vmem, size = 0x12000, scoped, tag = 'internal scratch']
  %s0 = inlined_call_operand.hbm [shape: f32[2,1,8,1024], index: 0, kind: input, shape index: {}]
  %s1 = inlined_call_operand.hbm [shape: f32[1,1024,128], index: 1, kind: input, shape index: {}]
  %s2 = inlined_call_operand.hbm [shape: f32[1,8,256], index: 2, kind: output, shape index: {}]
  %s3 = sld [smem:[#allocation0]]
  $region49: #{tpu_custom_call.1} parent=0
    _
  %s5 = ssub.s32 1, %s3
  %s6 = scalar_select 0, %s5, %s3
  $region1: #{tpu_custom_call.1} parent=0
    #allocation2 [shape = 'u8[65536]{0}', space=vmem, size = 0x10000, scoped, tag = 'input window, operand 0']
    #allocation3 [shape = 's32[2]{0}', space=sflag, size = 0x8, scoped, tag = 'scoped memory for tpu_custom_call.1']
    #allocation4 [shape = 's32[2]{0}', space=sflag, size = 0x8, scoped, tag = 'scoped memory for tpu_custom_call.1']
    #allocation5 [shape = 'u8[524288]{0}', space=vmem, size = 0x80000, scoped, tag = 'input window, operand 1, single buffered']
    #allocation6 [shape = 's32[1]{0}', space=sflag, size = 0x4, scoped, tag = 'scoped memory for tpu_custom_call.1']
    #allocation7 [shape = 'u8[8192]{0}', space=vmem, size = 0x2000, scoped, tag = 'output window, operand 0']
    %7 = vsyncpa [#allocation3], 0
    %s8 = scalar_lea.sflag [#allocation3], 1
    %9 = vsyncpa %s8, 0
    %10 = vsyncpa [#allocation6], 0
    %11 = vsyncpa [#allocation4], 0
    %s12 = scalar_lea.sflag [#allocation4], 1
    %13 = vsyncpa %s12, 0
    loop: start=0, step=1, limit=4
    $region2: #{tpu_custom_call.1} parent=1 // loop_pre_header
      _
    $region3: #{tpu_custom_call.1} parent=1 // loop_header
      %s15 = sphi 0, %s19
      %p16 = scmp.ge.s32.totalorder %s15, 4
      %s22 = sphi 0, %s34
      %s23 = sphi 0, %s30
      %s24 = sphi 0, %s22
      %s25 = sphi 0, %s23
      %s26 = sphi 0, %s24
      %s27 = sphi 0, %s25
      %s39 = sphi 0, %s41
      %s42 = sphi 0, %s39
      %s43 = sphi 0, %s42
      %s59 = sphi 0, %s43
      %s65 = sphi 0, %s67
      %s68 = sphi 0, %s65
      %s69 = sphi 0, %s68
      %s85 = sphi 0, %s69
      %s93 = sphi 0, %s95
      %s96 = sphi 0, %s93
      %s97 = sphi 0, %s96
      %s113 = sphi 0, %s97
    $region4: #{tpu_custom_call.1} parent=1 // loop_header_branch
      %18 = sbr.rel (%p16) target = $region8
    $region5: #{tpu_custom_call.1} parent=1 // loop_body
      %s20 = ssub.s32 %s15, 1
      %s21 = ssub.s32 %s15, 2
      %s28 = sadd.s32 1, %s23
      %p29 = scmp.ge.s32.totalorder %s28, 2
      %s30 = scalar_select %p29, 0, %s28
      %s31 = sadd.s32 1, %s22
      %s32 = scalar_select %p29, %s31, %s22
      %p33 = scmp.ge.s32.totalorder %s32, 1
      %s34 = scalar_select %p33, 0, %s32
      %s35 = ssub.s32 %s23, %s30
      %s36 = ssub.s32 %s22, %s34
      %s37 = sor.u32 %s35, %s36
      %p38 = scmp.eq.s32.totalorder %s37, 0
      %s40 = sadd.s32 %s39, 1
      %s41 = scalar_select %p38, %s39, %s40
      %p44 = pneg %p38
      %p45 = scmp.eq.s32.totalorder %s15, 1
      %p46 = por %p44, %p45
      %p47 = scmp.ne.s32.totalorder %s39, %s42
      %p48 = scmp.eq.s32.totalorder %s15, 0
      %p49 = por %p47, %p48
      %p50 = scmp.ne.s32.totalorder %s39, %s42
      %p51 = scmp.eq.s32.totalorder %s20, 1
      %p52 = por %p50, %p51
      %p53 = scmp.ne.s32.totalorder %s42, %s43
      %p54 = scmp.eq.s32.totalorder %s20, 0
      %p55 = por %p53, %p54
      %p56 = scmp.ne.s32.totalorder %s42, %s43
      %p57 = scmp.eq.s32.totalorder %s21, 1
      %p58 = por %p56, %p57
      %p60 = scmp.ne.s32.totalorder %s43, %s59
      %p61 = scmp.eq.s32.totalorder %s21, 0
      %p62 = por %p60, %p61
      %s63 = ssub.s32 %s22, %s34
      %p64 = scmp.eq.s32.totalorder %s63, 0
      %s66 = sadd.s32 %s65, 1
      %s67 = scalar_select %p64, %s65, %s66
      %p70 = pneg %p64
      %p71 = scmp.eq.s32.totalorder %s15, 1
      %p72 = por %p70, %p71
      %p73 = scmp.ne.s32.totalorder %s65, %s68
      %p74 = scmp.eq.s32.totalorder %s15, 0
      %p75 = por %p73, %p74
      %p76 = scmp.ne.s32.totalorder %s65, %s68
      %p77 = scmp.eq.s32.totalorder %s20, 1
      %p78 = por %p76, %p77
      %p79 = scmp.ne.s32.totalorder %s68, %s69
      %p80 = scmp.eq.s32.totalorder %s20, 0
      %p81 = por %p79, %p80
      %p82 = scmp.ne.s32.totalorder %s68, %s69
      %p83 = scmp.eq.s32.totalorder %s21, 1
      %p84 = por %p82, %p83
      %p86 = scmp.ne.s32.totalorder %s69, %s85
      %p87 = scmp.eq.s32.totalorder %s21, 0
      %p88 = por %p86, %p87
      %s89 = ssub.s32 %s22, %s34
      %s90 = ssub.s32 %s23, %s30
      %s91 = sor.u32 %s89, %s90
      %p92 = scmp.eq.s32.totalorder %s91, 0
      %s94 = sadd.s32 %s93, 1
      %s95 = scalar_select %p92, %s93, %s94
      %p98 = pneg %p92
      %p99 = scmp.eq.s32.totalorder %s15, 1
      %p100 = por %p98, %p99
      %p101 = scmp.ne.s32.totalorder %s93, %s96
      %p102 = scmp.eq.s32.totalorder %s15, 0
      %p103 = por %p101, %p102
      %p104 = scmp.ne.s32.totalorder %s93, %s96
      %p105 = scmp.eq.s32.totalorder %s20, 1
      %p106 = por %p104, %p105
      %p107 = scmp.ne.s32.totalorder %s96, %s97
      %p108 = scmp.eq.s32.totalorder %s20, 0
      %p109 = por %p107, %p108
      %p110 = scmp.ne.s32.totalorder %s96, %s97
      %p111 = scmp.eq.s32.totalorder %s21, 1
      %p112 = por %p110, %p111
      %p114 = scmp.ne.s32.totalorder %s97, %s113
      %p115 = scmp.eq.s32.totalorder %s21, 0
      %p116 = por %p114, %p115
      %p117 = scmp.le.s32.totalorder 1, %s15
      %p118 = scmp.lt.s32.totalorder %s15, 3
      %p119 = pnand %p117, %p118
      %p120 = pneg %p119
      // Predicated region
      $region9: #{tpu_custom_call.1} parent=5 // pred_check
        _
      $region10: #{tpu_custom_call.1} parent=5 // pred_check_branch
        %122 = sbr.rel (%p119) target = $region12
      $region11: #{tpu_custom_call.1} parent=5 // pred_region
        %s123 = ssub.s32 %s15, 1
        // Predicated region
        $region13: #{tpu_custom_call.1} parent=11 // pred_check
          %p124 = pneg %p81
        $region14: #{tpu_custom_call.1} parent=11 // pred_check_branch
          %126 = sbr.rel (%p124) target = $region16
        $region15: #{tpu_custom_call.1} parent=11 // pred_region
          %s128 = ssub.s32 16384, 16384
          %129 = vsyncadd [#allocation6], %s128
          %s130 = smul.addr %s24, 128
          %s131 = smul.addr %s130, 128
          %s132 = scalar_lea.hbm %s1, %s131
          %s133 = sshll.u32 [#allocation5], 4
          %s134 = int_to_ptr.vmem [resolvable:$true] %s133
          %139 = dma.hbm_to_vmem [thread:$0]  %s132, 16384, %s134, [#allocation6], 128, 128, 8
        $region16: #{tpu_custom_call.1} parent=11 // pred_fallthru
          _
      $region12: #{tpu_custom_call.1} parent=5 // pred_fallthru
        _
      %p140 = scmp.lt.s32.totalorder %s15, 2
      // Predicated region
      $region17: #{tpu_custom_call.1} parent=5 // pred_check
        %p141 = pneg %p140
      $region18: #{tpu_custom_call.1} parent=5 // pred_check_branch
        %143 = sbr.rel (%p141) target = $region20
      $region19: #{tpu_custom_call.1} parent=5 // pred_region
        // Predicated region
        $region21: #{tpu_custom_call.1} parent=19 // pred_check
          %p144 = pneg %p49
        $region22: #{tpu_custom_call.1} parent=19 // pred_check_branch
          %146 = sbr.rel (%p144) target = $region24
        $region23: #{tpu_custom_call.1} parent=19 // pred_region
          %s147 = sand.u32 %s39, 1
          %s148 = scalar_lea.sflag [#allocation3], %s147
          %s149 = sand.u32 %s39, 1
          %s150 = smul.addr %s149, 64
          %s151 = scalar_lea.vmem [#allocation2], %s150
          %s153 = ssub.s32 1024, 1024
          %154 = vsyncadd %s148, %s153
          %s155 = smul.addr %s22, 8
          %s156 = smul.addr %s23, 8
          %s157 = sadd.s32 %s155, %s156
          %s158 = smul.addr %s157, 128
          %s159 = scalar_lea.hbm %s0, %s158
          %s161 = sshll.u32 %s151, 4
          %s162 = int_to_ptr.vmem [resolvable:$true] %s161
          %164 = dma.hbm_to_vmem [thread:$0]  %s159, 1024, %s162, %s148
        $region24: #{tpu_custom_call.1} parent=19 // pred_fallthru
          _
      $region20: #{tpu_custom_call.1} parent=5 // pred_fallthru
        _
      %p165 = scmp.le.s32.totalorder 1, %s15
      %p166 = scmp.lt.s32.totalorder %s15, 3
      %p167 = pnand %p165, %p166
      %p168 = pneg %p167
      // Predicated region
      $region25: #{tpu_custom_call.1} parent=5 // pred_check
        _
      $region26: #{tpu_custom_call.1} parent=5 // pred_check_branch
        %170 = sbr.rel (%p167) target = $region28
      $region27: #{tpu_custom_call.1} parent=5 // pred_region
        %s171 = ssub.s32 %s15, 1
        %s172 = sand.u32 %s42, 1
        %s173 = scalar_lea.sflag [#allocation3], %s172
        %s174 = sand.u32 %s42, 1
        %s175 = smul.addr %s174, 64
        %s176 = scalar_lea.vmem [#allocation2], %s175
        // Predicated region
        $region29: #{tpu_custom_call.1} parent=27 // pred_check
          %p177 = pneg %p55
        $region30: #{tpu_custom_call.1} parent=27 // pred_check_branch
          %179 = sbr.rel (%p177) target = $region32
        $region31: #{tpu_custom_call.1} parent=27 // pred_region
          %180 = dma.done %s173, 1024
        $region32: #{tpu_custom_call.1} parent=27 // pred_fallthru
          _
        // Predicated region
        $region33: #{tpu_custom_call.1} parent=27 // pred_check
          %p181 = pneg %p81
        $region34: #{tpu_custom_call.1} parent=27 // pred_check_branch
          %183 = sbr.rel (%p181) target = $region36
        $region35: #{tpu_custom_call.1} parent=27 // pred_region
          %184 = dma.done [#allocation6], 16384
        $region36: #{tpu_custom_call.1} parent=27 // pred_fallthru
          _
        %s185 = sand.u32 %s42, 1
        %s186 = scalar_lea.sflag [#allocation3], %s185
        %s187 = sand.u32 %s42, 1
        %s188 = smul.addr %s187, 64
        %s189 = scalar_lea.vmem [#allocation2], %s188
        %p190 = pneg %p55
        %p191 = pneg %p52
        %p192 = pneg %p81
        %p193 = pneg %p78
        %p194 = pneg %p109
        %p195 = pneg %p106
        %s196 = sand.u32 %s96, 1
        %s197 = scalar_lea.sflag [#allocation4], %s196
        %s198 = sand.u32 %s96, 1
        %s199 = smul.addr %s198, 8
        %s200 = scalar_lea.vmem [#allocation7], %s199
        %v201 = vld [vmem:[%s176] sm:$0xff]
        %v202 = vld [vmem:[%s176 + $0x8] sm:$0xff]
        %v203 = vld [vmem:[%s176 + $0x10] sm:$0xff]
        %v204 = vld [vmem:[%s176 + $0x18] sm:$0xff]
        %v205 = vld [vmem:[%s176 + $0x20] sm:$0xff]
        %v206 = vld [vmem:[%s176 + $0x28] sm:$0xff]
        %v207 = vld [vmem:[%s176 + $0x30] sm:$0xff]
        %v208 = vld [vmem:[%s176 + $0x38] sm:$0xff]
        %v209 = vld [vmem:[#allocation5] sm:$0xff]
        %v210 = vld [vmem:[#allocation5 + $0x8] sm:$0xff]
        %v211 = vld [vmem:[#allocation5 + $0x10] sm:$0xff]
        %v212 = vld [vmem:[#allocation5 + $0x18] sm:$0xff]
        %v213 = vld [vmem:[#allocation5 + $0x20] sm:$0xff]
        %v214 = vld [vmem:[#allocation5 + $0x28] sm:$0xff]
        %v215 = vld [vmem:[#allocation5 + $0x30] sm:$0xff]
        %v216 = vld [vmem:[#allocation5 + $0x38] sm:$0xff]
        %v217 = vld [vmem:[#allocation5 + $0x40] sm:$0xff]
        %v218 = vld [vmem:[#allocation5 + $0x48] sm:$0xff]
        %v219 = vld [vmem:[#allocation5 + $0x50] sm:$0xff]
        %v220 = vld [vmem:[#allocation5 + $0x58] sm:$0xff]
        %v221 = vld [vmem:[#allocation5 + $0x60] sm:$0xff]
        %v222 = vld [vmem:[#allocation5 + $0x68] sm:$0xff]
        %v223 = vld [vmem:[#allocation5 + $0x70] sm:$0xff]
        %v224 = vld [vmem:[#allocation5 + $0x78] sm:$0xff]
        %v225 = vld [vmem:[#allocation5 + $0x80] sm:$0xff]
        %v226 = vld [vmem:[#allocation5 + $0x88] sm:$0xff]
        %v227 = vld [vmem:[#allocation5 + $0x90] sm:$0xff]
        %v228 = vld [vmem:[#allocation5 + $0x98] sm:$0xff]
        %v229 = vld [vmem:[#allocation5 + $0xa0] sm:$0xff]
        %v230 = vld [vmem:[#allocation5 + $0xa8] sm:$0xff]
        %v231 = vld [vmem:[#allocation5 + $0xb0] sm:$0xff]
        %v232 = vld [vmem:[#allocation5 + $0xb8] sm:$0xff]
        %v233 = vld [vmem:[#allocation5 + $0xc0] sm:$0xff]
        %v234 = vld [vmem:[#allocation5 + $0xc8] sm:$0xff]
        %v235 = vld [vmem:[#allocation5 + $0xd0] sm:$0xff]
        %v236 = vld [vmem:[#allocation5 + $0xd8] sm:$0xff]
        %v237 = vld [vmem:[#allocation5 + $0xe0] sm:$0xff]
        %v238 = vld [vmem:[#allocation5 + $0xe8] sm:$0xff]
        %v239 = vld [vmem:[#allocation5 + $0xf0] sm:$0xff]
        %v240 = vld [vmem:[#allocation5 + $0xf8] sm:$0xff]
        %v241 = vld [vmem:[#allocation5 + $0x100] sm:$0xff]
        %v242 = vld [vmem:[#allocation5 + $0x108] sm:$0xff]
        %v243 = vld [vmem:[#allocation5 + $0x110] sm:$0xff]
        %v244 = vld [vmem:[#allocation5 + $0x118] sm:$0xff]
        %v245 = vld [vmem:[#allocation5 + $0x120] sm:$0xff]
        %v246 = vld [vmem:[#allocation5 + $0x128] sm:$0xff]
        %v247 = vld [vmem:[#allocation5 + $0x130] sm:$0xff]
        %v248 = vld [vmem:[#allocation5 + $0x138] sm:$0xff]
        %v249 = vld [vmem:[#allocation5 + $0x140] sm:$0xff]
        %v250 = vld [vmem:[#allocation5 + $0x148] sm:$0xff]
        %v251 = vld [vmem:[#allocation5 + $0x150] sm:$0xff]
        %v252 = vld [vmem:[#allocation5 + $0x158] sm:$0xff]
        %v253 = vld [vmem:[#allocation5 + $0x160] sm:$0xff]
        %v254 = vld [vmem:[#allocation5 + $0x168] sm:$0xff]
        %v255 = vld [vmem:[#allocation5 + $0x170] sm:$0xff]
        %v256 = vld [vmem:[#allocation5 + $0x178] sm:$0xff]
        %v257 = vld [vmem:[#allocation5 + $0x180] sm:$0xff]
        %v258 = vld [vmem:[#allocation5 + $0x188] sm:$0xff]
        %v259 = vld [vmem:[#allocation5 + $0x190] sm:$0xff]
        %v260 = vld [vmem:[#allocation5 + $0x198] sm:$0xff]
        %v261 = vld [vmem:[#allocation5 + $0x1a0] sm:$0xff]
        %v262 = vld [vmem:[#allocation5 + $0x1a8] sm:$0xff]
        %v263 = vld [vmem:[#allocation5 + $0x1b0] sm:$0xff]
        %v264 = vld [vmem:[#allocation5 + $0x1b8] sm:$0xff]
        %v265 = vld [vmem:[#allocation5 + $0x1c0] sm:$0xff]
        %v266 = vld [vmem:[#allocation5 + $0x1c8] sm:$0xff]
        %v267 = vld [vmem:[#allocation5 + $0x1d0] sm:$0xff]
        %v268 = vld [vmem:[#allocation5 + $0x1d8] sm:$0xff]
        %v269 = vld [vmem:[#allocation5 + $0x1e0] sm:$0xff]
        %v270 = vld [vmem:[#allocation5 + $0x1e8] sm:$0xff]
        %v271 = vld [vmem:[#allocation5 + $0x1f0] sm:$0xff]
        %v272 = vld [vmem:[#allocation5 + $0x1f8] sm:$0xff]
        %v273 = vld [vmem:[#allocation5 + $0x200] sm:$0xff]
        %v274 = vld [vmem:[#allocation5 + $0x208] sm:$0xff]
        %v275 = vld [vmem:[#allocation5 + $0x210] sm:$0xff]
        %v276 = vld [vmem:[#allocation5 + $0x218] sm:$0xff]
        %v277 = vld [vmem:[#allocation5 + $0x220] sm:$0xff]
        %v278 = vld [vmem:[#allocation5 + $0x228] sm:$0xff]
        %v279 = vld [vmem:[#allocation5 + $0x230] sm:$0xff]
        %v280 = vld [vmem:[#allocation5 + $0x238] sm:$0xff]
        %v281 = vld [vmem:[#allocation5 + $0x240] sm:$0xff]
        %v282 = vld [vmem:[#allocation5 + $0x248] sm:$0xff]
        %v283 = vld [vmem:[#allocation5 + $0x250] sm:$0xff]
        %v284 = vld [vmem:[#allocation5 + $0x258] sm:$0xff]
        %v285 = vld [vmem:[#allocation5 + $0x260] sm:$0xff]
        %v286 = vld [vmem:[#allocation5 + $0x268] sm:$0xff]
        %v287 = vld [vmem:[#allocation5 + $0x270] sm:$0xff]
        %v288 = vld [vmem:[#allocation5 + $0x278] sm:$0xff]
        %v289 = vld [vmem:[#allocation5 + $0x280] sm:$0xff]
        %v290 = vld [vmem:[#allocation5 + $0x288] sm:$0xff]
        %v291 = vld [vmem:[#allocation5 + $0x290] sm:$0xff]
        %v292 = vld [vmem:[#allocation5 + $0x298] sm:$0xff]
        %v293 = vld [vmem:[#allocation5 + $0x2a0] sm:$0xff]
        %v294 = vld [vmem:[#allocation5 + $0x2a8] sm:$0xff]
        %v295 = vld [vmem:[#allocation5 + $0x2b0] sm:$0xff]
        %v296 = vld [vmem:[#allocation5 + $0x2b8] sm:$0xff]
        %v297 = vld [vmem:[#allocation5 + $0x2c0] sm:$0xff]
        %v298 = vld [vmem:[#allocation5 + $0x2c8] sm:$0xff]
        %v299 = vld [vmem:[#allocation5 + $0x2d0] sm:$0xff]
        %v300 = vld [vmem:[#allocation5 + $0x2d8] sm:$0xff]
        %v301 = vld [vmem:[#allocation5 + $0x2e0] sm:$0xff]
        %v302 = vld [vmem:[#allocation5 + $0x2e8] sm:$0xff]
        %v303 = vld [vmem:[#allocation5 + $0x2f0] sm:$0xff]
        %v304 = vld [vmem:[#allocation5 + $0x2f8] sm:$0xff]
        %v305 = vld [vmem:[#allocation5 + $0x300] sm:$0xff]
        %v306 = vld [vmem:[#allocation5 + $0x308] sm:$0xff]
        %v307 = vld [vmem:[#allocation5 + $0x310] sm:$0xff]
        %v308 = vld [vmem:[#allocation5 + $0x318] sm:$0xff]
        %v309 = vld [vmem:[#allocation5 + $0x320] sm:$0xff]
        %v310 = vld [vmem:[#allocation5 + $0x328] sm:$0xff]
        %v311 = vld [vmem:[#allocation5 + $0x330] sm:$0xff]
        %v312 = vld [vmem:[#allocation5 + $0x338] sm:$0xff]
        %v313 = vld [vmem:[#allocation5 + $0x340] sm:$0xff]
        %v314 = vld [vmem:[#allocation5 + $0x348] sm:$0xff]
        %v315 = vld [vmem:[#allocation5 + $0x350] sm:$0xff]
        %v316 = vld [vmem:[#allocation5 + $0x358] sm:$0xff]
        %v317 = vld [vmem:[#allocation5 + $0x360] sm:$0xff]
        %v318 = vld [vmem:[#allocation5 + $0x368] sm:$0xff]
        %v319 = vld [vmem:[#allocation5 + $0x370] sm:$0xff]
        %v320 = vld [vmem:[#allocation5 + $0x378] sm:$0xff]
        %v321 = vld [vmem:[#allocation5 + $0x380] sm:$0xff]
        %v322 = vld [vmem:[#allocation5 + $0x388] sm:$0xff]
        %v323 = vld [vmem:[#allocation5 + $0x390] sm:$0xff]
        %v324 = vld [vmem:[#allocation5 + $0x398] sm:$0xff]
        %v325 = vld [vmem:[#allocation5 + $0x3a0] sm:$0xff]
        %v326 = vld [vmem:[#allocation5 + $0x3a8] sm:$0xff]
        %v327 = vld [vmem:[#allocation5 + $0x3b0] sm:$0xff]
        %v328 = vld [vmem:[#allocation5 + $0x3b8] sm:$0xff]
        %v329 = vld [vmem:[#allocation5 + $0x3c0] sm:$0xff]
        %v330 = vld [vmem:[#allocation5 + $0x3c8] sm:$0xff]
        %v331 = vld [vmem:[#allocation5 + $0x3d0] sm:$0xff]
        %v332 = vld [vmem:[#allocation5 + $0x3d8] sm:$0xff]
        %v333 = vld [vmem:[#allocation5 + $0x3e0] sm:$0xff]
        %v334 = vld [vmem:[#allocation5 + $0x3e8] sm:$0xff]
        %v335 = vld [vmem:[#allocation5 + $0x3f0] sm:$0xff]
        %v336 = vld [vmem:[#allocation5 + $0x3f8] sm:$0xff]
        %337 = vmatprep.subr.mxu0 0.0
        %338 = vmatpush1.msra.mxu0 %v224
        %339 = vmatprep.subr.mxu0 0.0
        %340 = vmatpush1.msra.mxu0 %v223
        %341 = vmatprep.subr.mxu0 0.0
        %342 = vmatpush1.msra.mxu0 %v222
        %343 = vmatprep.subr.mxu0 0.0
        %344 = vmatpush1.msra.mxu0 %v221
        %345 = vmatprep.subr.mxu0 0.0
        %346 = vmatpush1.msra.mxu0 %v220
        %347 = vmatprep.subr.mxu0 0.0
        %348 = vmatpush1.msra.mxu0 %v219
        %349 = vmatprep.subr.mxu0 0.0
        %350 = vmatpush1.msra.mxu0 %v218
        %351 = vmatprep.subr.mxu0 0.0
        %352 = vmatpush1.msra.mxu0 %v217
        %353 = vmatprep.subr.mxu0 0.0
        %354 = vmatpush1.msra.mxu0 %v216
        %355 = vmatprep.subr.mxu0 0.0
        %356 = vmatpush1.msra.mxu0 %v215
        %357 = vmatprep.subr.mxu0 0.0
        %358 = vmatpush1.msra.mxu0 %v214
        %359 = vmatprep.subr.mxu0 0.0
        %360 = vmatpush1.msra.mxu0 %v213
        %361 = vmatprep.subr.mxu0 0.0
        %362 = vmatpush1.msra.mxu0 %v212
        %363 = vmatprep.subr.mxu0 0.0
        %364 = vmatpush1.msra.mxu0 %v211
        %365 = vmatprep.subr.mxu0 0.0
        %366 = vmatpush1.msra.mxu0 %v210
        %367 = vmatprep.subr.mxu0 0.0
        %368 = vmatpush1.msra.mxu0 %v209
        %369 = vmatprep.subr.mxu0 0.0
        %370 = vmatpush2.msra.mxu0 %v240
        %371 = vmatprep.subr.mxu0 0.0
        %372 = vmatpush2.msra.mxu0 %v239
        %373 = vmatprep.subr.mxu0 0.0
        %374 = vmatpush2.msra.mxu0 %v238
        %375 = vmatprep.subr.mxu0 0.0
        %376 = vmatpush2.msra.mxu0 %v237
        %377 = vmatprep.subr.mxu0 0.0
        %378 = vmatpush2.msra.mxu0 %v236
        %379 = vmatprep.subr.mxu0 0.0
        %380 = vmatpush2.msra.mxu0 %v235
        %381 = vmatprep.subr.mxu0 0.0
        %382 = vmatpush2.msra.mxu0 %v234
        %383 = vmatprep.subr.mxu0 0.0
        %384 = vmatpush2.msra.mxu0 %v233
        %385 = vmatprep.subr.mxu0 0.0
        %386 = vmatpush2.msra.mxu0 %v232
        %387 = vmatprep.subr.mxu0 0.0
        %388 = vmatpush2.msra.mxu0 %v231
        %389 = vmatprep.subr.mxu0 0.0
        %390 = vmatpush2.msra.mxu0 %v230
        %391 = vmatprep.subr.mxu0 0.0
        %392 = vmatpush2.msra.mxu0 %v229
        %393 = vmatprep.subr.mxu0 0.0
        %394 = vmatpush2.msra.mxu0 %v228
        %395 = vmatprep.subr.mxu0 0.0
        %396 = vmatpush2.msra.mxu0 %v227
        %397 = vmatprep.subr.mxu0 0.0
        %398 = vmatpush2.msra.mxu0 %v226
        %399 = vmatprep.subr.mxu0 0.0
        %400 = vmatpush2.msra.mxu0 %v225
        %401 = vmatprep.mubr.f32.mxu0 %v202
        %402 = vmatmul.mubr.f32.gmra.mxu0 %v201
        %v403 = vpop.f32.mrf.mxu0
        %v404 = vadd.f32 0.0, %v403
        %v405 = vpop.f32.mrf.mxu0
        %406 = vdwg.mxu0
        %407 = vmatprep.subr.mxu0 0.0
        %408 = vmatpush1.msra.mxu0 %v256
        %409 = vmatprep.subr.mxu0 0.0
        %410 = vmatpush1.msra.mxu0 %v255
        %411 = vmatprep.subr.mxu0 0.0
        %412 = vmatpush1.msra.mxu0 %v254
        %413 = vmatprep.subr.mxu0 0.0
        %414 = vmatpush1.msra.mxu0 %v253
        %415 = vmatprep.subr.mxu0 0.0
        %416 = vmatpush1.msra.mxu0 %v252
        %417 = vmatprep.subr.mxu0 0.0
        %418 = vmatpush1.msra.mxu0 %v251
        %419 = vmatprep.subr.mxu0 0.0
        %420 = vmatpush1.msra.mxu0 %v250
        %421 = vmatprep.subr.mxu0 0.0
        %422 = vmatpush1.msra.mxu0 %v249
        %423 = vmatprep.subr.mxu0 0.0
        %424 = vmatpush1.msra.mxu0 %v248
        %425 = vmatprep.subr.mxu0 0.0
        %426 = vmatpush1.msra.mxu0 %v247
        %427 = vmatprep.subr.mxu0 0.0
        %428 = vmatpush1.msra.mxu0 %v246
        %429 = vmatprep.subr.mxu0 0.0
        %430 = vmatpush1.msra.mxu0 %v245
        %431 = vmatprep.subr.mxu0 0.0
        %432 = vmatpush1.msra.mxu0 %v244
        %433 = vmatprep.subr.mxu0 0.0
        %434 = vmatpush1.msra.mxu0 %v243
        %435 = vmatprep.subr.mxu0 0.0
        %436 = vmatpush1.msra.mxu0 %v242
        %437 = vmatprep.subr.mxu0 0.0
        %438 = vmatpush1.msra.mxu0 %v241
        %439 = vmatprep.subr.mxu0 0.0
        %440 = vmatpush2.msra.mxu0 %v272
        %441 = vmatprep.subr.mxu0 0.0
        %442 = vmatpush2.msra.mxu0 %v271
        %443 = vmatprep.subr.mxu0 0.0
        %444 = vmatpush2.msra.mxu0 %v270
        %445 = vmatprep.subr.mxu0 0.0
        %446 = vmatpush2.msra.mxu0 %v269
        %447 = vmatprep.subr.mxu0 0.0
        %448 = vmatpush2.msra.mxu0 %v268
        %449 = vmatprep.subr.mxu0 0.0
        %450 = vmatpush2.msra.mxu0 %v267
        %451 = vmatprep.subr.mxu0 0.0
        %452 = vmatpush2.msra.mxu0 %v266
        %453 = vmatprep.subr.mxu0 0.0
        %454 = vmatpush2.msra.mxu0 %v265
        %455 = vmatprep.subr.mxu0 0.0
        %456 = vmatpush2.msra.mxu0 %v264
        %457 = vmatprep.subr.mxu0 0.0
        %458 = vmatpush2.msra.mxu0 %v263
        %459 = vmatprep.subr.mxu0 0.0
        %460 = vmatpush2.msra.mxu0 %v262
        %461 = vmatprep.subr.mxu0 0.0
        %462 = vmatpush2.msra.mxu0 %v261
        %463 = vmatprep.subr.mxu0 0.0
        %464 = vmatpush2.msra.mxu0 %v260
        %465 = vmatprep.subr.mxu0 0.0
        %466 = vmatpush2.msra.mxu0 %v259
        %467 = vmatprep.subr.mxu0 0.0
        %468 = vmatpush2.msra.mxu0 %v258
        %469 = vmatprep.subr.mxu0 0.0
        %470 = vmatpush2.msra.mxu0 %v257
        %471 = vmatprep.mubr.f32.mxu0 %v204
        %472 = vmatmul.mubr.f32.gmra.mxu0 %v203
        %v473 = vpop.f32.mrf.mxu0
        %v474 = vadd.f32 %v404, %v473
        %v475 = vpop.f32.mrf.mxu0
        %476 = vdwg.mxu0
        %477 = vmatprep.subr.mxu0 0.0
        %478 = vmatpush1.msra.mxu0 %v288
        %479 = vmatprep.subr.mxu0 0.0
        %480 = vmatpush1.msra.mxu0 %v287
        %481 = vmatprep.subr.mxu0 0.0
        %482 = vmatpush1.msra.mxu0 %v286
        %483 = vmatprep.subr.mxu0 0.0
        %484 = vmatpush1.msra.mxu0 %v285
        %485 = vmatprep.subr.mxu0 0.0
        %486 = vmatpush1.msra.mxu0 %v284
        %487 = vmatprep.subr.mxu0 0.0
        %488 = vmatpush1.msra.mxu0 %v283
        %489 = vmatprep.subr.mxu0 0.0
        %490 = vmatpush1.msra.mxu0 %v282
        %491 = vmatprep.subr.mxu0 0.0
        %492 = vmatpush1.msra.mxu0 %v281
        %493 = vmatprep.subr.mxu0 0.0
        %494 = vmatpush1.msra.mxu0 %v280
        %495 = vmatprep.subr.mxu0 0.0
        %496 = vmatpush1.msra.mxu0 %v279
        %497 = vmatprep.subr.mxu0 0.0
        %498 = vmatpush1.msra.mxu0 %v278
        %499 = vmatprep.subr.mxu0 0.0
        %500 = vmatpush1.msra.mxu0 %v277
        %501 = vmatprep.subr.mxu0 0.0
        %502 = vmatpush1.msra.mxu0 %v276
        %503 = vmatprep.subr.mxu0 0.0
        %504 = vmatpush1.msra.mxu0 %v275
        %505 = vmatprep.subr.mxu0 0.0
        %506 = vmatpush1.msra.mxu0 %v274
        %507 = vmatprep.subr.mxu0 0.0
        %508 = vmatpush1.msra.mxu0 %v273
        %509 = vmatprep.subr.mxu0 0.0
        %510 = vmatpush2.msra.mxu0 %v304
        %511 = vmatprep.subr.mxu0 0.0
        %512 = vmatpush2.msra.mxu0 %v303
        %513 = vmatprep.subr.mxu0 0.0
        %514 = vmatpush2.msra.mxu0 %v302
        %515 = vmatprep.subr.mxu0 0.0
        %516 = vmatpush2.msra.mxu0 %v301
        %517 = vmatprep.subr.mxu0 0.0
        %518 = vmatpush2.msra.mxu0 %v300
        %519 = vmatprep.subr.mxu0 0.0
        %520 = vmatpush2.msra.mxu0 %v299
        %521 = vmatprep.subr.mxu0 0.0
        %522 = vmatpush2.msra.mxu0 %v298
        %523 = vmatprep.subr.mxu0 0.0
        %524 = vmatpush2.msra.mxu0 %v297
        %525 = vmatprep.subr.mxu0 0.0
        %526 = vmatpush2.msra.mxu0 %v296
        %527 = vmatprep.subr.mxu0 0.0
        %528 = vmatpush2.msra.mxu0 %v295
        %529 = vmatprep.subr.mxu0 0.0
        %530 = vmatpush2.msra.mxu0 %v294
        %531 = vmatprep.subr.mxu0 0.0
        %532 = vmatpush2.msra.mxu0 %v293
        %533 = vmatprep.subr.mxu0 0.0
        %534 = vmatpush2.msra.mxu0 %v292
        %535 = vmatprep.subr.mxu0 0.0
        %536 = vmatpush2.msra.mxu0 %v291
        %537 = vmatprep.subr.mxu0 0.0
        %538 = vmatpush2.msra.mxu0 %v290
        %539 = vmatprep.subr.mxu0 0.0
        %540 = vmatpush2.msra.mxu0 %v289
        %541 = vmatprep.mubr.f32.mxu0 %v206
        %542 = vmatmul.mubr.f32.gmra.mxu0 %v205
        %v543 = vpop.f32.mrf.mxu0
        %v544 = vadd.f32 %v474, %v543
        %v545 = vpop.f32.mrf.mxu0
        %546 = vdwg.mxu0
        %547 = vmatprep.subr.mxu0 0.0
        %548 = vmatpush1.msra.mxu0 %v320
        %549 = vmatprep.subr.mxu0 0.0
        %550 = vmatpush1.msra.mxu0 %v319
        %551 = vmatprep.subr.mxu0 0.0
        %552 = vmatpush1.msra.mxu0 %v318
        %553 = vmatprep.subr.mxu0 0.0
        %554 = vmatpush1.msra.mxu0 %v317
        %555 = vmatprep.subr.mxu0 0.0
        %556 = vmatpush1.msra.mxu0 %v316
        %557 = vmatprep.subr.mxu0 0.0
        %558 = vmatpush1.msra.mxu0 %v315
        %559 = vmatprep.subr.mxu0 0.0
        %560 = vmatpush1.msra.mxu0 %v314
        %561 = vmatprep.subr.mxu0 0.0
        %562 = vmatpush1.msra.mxu0 %v313
        %563 = vmatprep.subr.mxu0 0.0
        %564 = vmatpush1.msra.mxu0 %v312
        %565 = vmatprep.subr.mxu0 0.0
        %566 = vmatpush1.msra.mxu0 %v311
        %567 = vmatprep.subr.mxu0 0.0
        %568 = vmatpush1.msra.mxu0 %v310
        %569 = vmatprep.subr.mxu0 0.0
        %570 = vmatpush1.msra.mxu0 %v309
        %571 = vmatprep.subr.mxu0 0.0
        %572 = vmatpush1.msra.mxu0 %v308
        %573 = vmatprep.subr.mxu0 0.0
        %574 = vmatpush1.msra.mxu0 %v307
        %575 = vmatprep.subr.mxu0 0.0
        %576 = vmatpush1.msra.mxu0 %v306
        %577 = vmatprep.subr.mxu0 0.0
        %578 = vmatpush1.msra.mxu0 %v305
        %579 = vmatprep.subr.mxu0 0.0
        %580 = vmatpush2.msra.mxu0 %v336
        %581 = vmatprep.subr.mxu0 0.0
        %582 = vmatpush2.msra.mxu0 %v335
        %583 = vmatprep.subr.mxu0 0.0
        %584 = vmatpush2.msra.mxu0 %v334
        %585 = vmatprep.subr.mxu0 0.0
        %586 = vmatpush2.msra.mxu0 %v333
        %587 = vmatprep.subr.mxu0 0.0
        %588 = vmatpush2.msra.mxu0 %v332
        %589 = vmatprep.subr.mxu0 0.0
        %590 = vmatpush2.msra.mxu0 %v331
        %591 = vmatprep.subr.mxu0 0.0
        %592 = vmatpush2.msra.mxu0 %v330
        %593 = vmatprep.subr.mxu0 0.0
        %594 = vmatpush2.msra.mxu0 %v329
        %595 = vmatprep.subr.mxu0 0.0
        %596 = vmatpush2.msra.mxu0 %v328
        %597 = vmatprep.subr.mxu0 0.0
        %598 = vmatpush2.msra.mxu0 %v327
        %599 = vmatprep.subr.mxu0 0.0
        %600 = vmatpush2.msra.mxu0 %v326
        %601 = vmatprep.subr.mxu0 0.0
        %602 = vmatpush2.msra.mxu0 %v325
        %603 = vmatprep.subr.mxu0 0.0
        %604 = vmatpush2.msra.mxu0 %v324
        %605 = vmatprep.subr.mxu0 0.0
        %606 = vmatpush2.msra.mxu0 %v323
        %607 = vmatprep.subr.mxu0 0.0
        %608 = vmatpush2.msra.mxu0 %v322
        %609 = vmatprep.subr.mxu0 0.0
        %610 = vmatpush2.msra.mxu0 %v321
        %611 = vmatprep.mubr.f32.mxu0 %v208
        %612 = vmatmul.mubr.f32.gmra.mxu0 %v207
        %v613 = vpop.f32.mrf.mxu0
        %v614 = vadd.f32 %v544, %v613
        %v615 = vpop.f32.mrf.mxu0
        %616 = vdwg.mxu0
        %617 = vst [vmem:[%s200] sm:$0xff] %v614
        %s618 = sand.u32 %s96, 1
        %s619 = scalar_lea.sflag [#allocation4], %s618
        %s620 = sand.u32 %s96, 1
        %s621 = smul.addr %s620, 8
        %s622 = scalar_lea.vmem [#allocation7], %s621
        // Predicated region
        $region37: #{tpu_custom_call.1} parent=27 // pred_check
          %p623 = pneg %p106
        $region38: #{tpu_custom_call.1} parent=27 // pred_check_branch
          %625 = sbr.rel (%p623) target = $region40
        $region39: #{tpu_custom_call.1} parent=27 // pred_region
          %s627 = ssub.s32 128, 128
          %628 = vsyncadd %s619, %s627
          %s629 = smul.addr %s24, 2
          %s630 = sadd.s32 %s25, %s629
          %s631 = smul.addr %s630, 128
          %s632 = scalar_lea.hbm %s2, %s631
          %s634 = sshll.u32 %s622, 4
          %s635 = int_to_ptr.vmem [resolvable:$true] %s634
          %637 = dma.vmem_to_hbm [thread:$0]  %s635, 128, %s632, %s619
        $region40: #{tpu_custom_call.1} parent=27 // pred_fallthru
          _
      $region28: #{tpu_custom_call.1} parent=5 // pred_fallthru
        _
      %p638 = scmp.le.s32.totalorder 2, %s15
      // Predicated region
      $region41: #{tpu_custom_call.1} parent=5 // pred_check
        %p639 = pneg %p638
      $region42: #{tpu_custom_call.1} parent=5 // pred_check_branch
        %641 = sbr.rel (%p639) target = $region44
      $region43: #{tpu_custom_call.1} parent=5 // pred_region
        %s642 = ssub.s32 %s15, 2
        // Predicated region
        $region45: #{tpu_custom_call.1} parent=43 // pred_check
          %p643 = pneg %p112
        $region46: #{tpu_custom_call.1} parent=43 // pred_check_branch
          %645 = sbr.rel (%p643) target = $region48
        $region47: #{tpu_custom_call.1} parent=43 // pred_region
          %s646 = sand.u32 %s97, 1
          %s647 = scalar_lea.sflag [#allocation4], %s646
          %s648 = sand.u32 %s97, 1
          %s649 = smul.addr %s648, 8
          %s650 = scalar_lea.vmem [#allocation7], %s649
          %651 = dma.done %s647, 128
        $region48: #{tpu_custom_call.1} parent=43 // pred_fallthru
          _
      $region44: #{tpu_custom_call.1} parent=5 // pred_fallthru
        _
    $region6: #{tpu_custom_call.1} parent=1 // loop_footer
      %s19 = sadd.s32 1, %s15
    $region7: #{tpu_custom_call.1} parent=1 // loop_footer_branch
      %14 = sbr.rel target = $region3
    $region8: #{tpu_custom_call.1} parent=1 // loop_exit
      _
    %652 = vsyncpa [#allocation3], 1
    %s653 = scalar_lea.sflag [#allocation3], 1
    %654 = vsyncpa %s653, 1
    %655 = vsyncpa [#allocation6], 1
    %656 = vsyncpa [#allocation4], 1
    %s657 = scalar_lea.sflag [#allocation4], 1
    %658 = vsyncpa %s657, 1

</llo_original>
